<compile_context>
chip_gen: v7x
topology: tpu7x:2x2x1
jax: 0.10.0
libtpu: 0.0.40
codegen_flags: <defaults>
</compile_context>

<pallas_src>
import jax
import jax.numpy as jnp
from jax.experimental import pallas as pl
from jax.experimental.pallas import tpu as pltpu


# ----------------------------------------------------------------------------
# Kernel
# ----------------------------------------------------------------------------
def _mean_pool_kernel(nvt_ref, m_ref, h_ref, pooled_ref, acc_ref, cnt_ref):
    """One (batch-tile, seq-tile) grid step of masked mean pooling.

    nvt_ref:    SMEM [num_b_tiles] int32   non-padded seq-tile count per batch tile
    m_ref:      VMEM [B_T, 1, S_T] f32     attention-mask slice
    h_ref:      VMEM [B_T, S_T, H]         hidden-state slice (native dtype, e.g. bf16)
    pooled_ref: VMEM [B_T, 1, H]  f32      output (resident across the S axis)
    acc_ref:    VMEM [B_T, 1, H]  f32      running masked sum
    cnt_ref:    VMEM [B_T, 1, 1]  f32      running mask count
    """
    b = pl.program_id(0)
    s = pl.program_id(1)
    ns = pl.num_programs(1)

    @pl.when(s == 0)
    def _init():
        acc_ref[...] = jnp.zeros_like(acc_ref)
        cnt_ref[...] = jnp.zeros_like(cnt_ref)

    # Skip sequence tiles that are entirely padding for this batch tile.
    @pl.when(s < nvt_ref[b])
    def _accumulate():
        m = m_ref[...]                                    # [B_T, 1, S_T] f32
        h = h_ref[...]                                    # [B_T, S_T, H] native dtype
        # Masked sum over S as a batched MXU contraction with f32 accumulation:
        #   acc[b, 0, :] += m[b, 0, :] @ h[b, :, :]
        acc_ref[...] += jnp.einsum(
            "bqs,bsh->bqh", m.astype(h.dtype), h,
            preferred_element_type=jnp.float32)
        cnt_ref[...] += jnp.sum(m, axis=2, keepdims=True)

    @pl.when(s == ns - 1)
    def _finalize():
        denom = jnp.maximum(cnt_ref[...], 1e-9)           # torch.clamp(min=1e-9)
        inv = pl.reciprocal(denom, approx=True)           # EUP slot; VALU stays free
        pooled_ref[...] = (acc_ref[...] * inv).astype(pooled_ref.dtype)


# ----------------------------------------------------------------------------
# Wrapper
# ----------------------------------------------------------------------------
def _pick_tile(dim, quantum, max_tile):
    """Largest tile <= max_tile that divides `dim` and is a multiple of `quantum`;
    falls back to the full dim (full-extent blocks are always legal)."""
    if dim <= max_tile:
        return dim
    t = (max_tile // quantum) * quantum
    while t >= quantum:
        if dim % t == 0:
            return t
        t -= quantum
    return dim


def masked_mean_pool(last_hidden_state, attention_mask, *, b_tile=None, s_tile=None):
    """Masked mean pooling over the sequence axis (MeanPooling.forward)."""
    B, S, H = last_hidden_state.shape
    itemsize = jnp.dtype(last_hidden_state.dtype).itemsize

    if b_tile is None:
        b_tile = _pick_tile(B, 8, 8)
    if s_tile is None:
        # Biggest S tile (multiple of 128) keeping the hidden-state block <= ~4 MiB.
        budget = 4 * 1024 * 1024
        max_s = max(128, (budget // max(1, b_tile * H * itemsize)) // 128 * 128)
        s_tile = _pick_tile(S, 128, min(max_s, 512))
    assert B % b_tile == 0 and S % s_tile == 0, (B, b_tile, S, s_tile)
    num_b = B // b_tile
    num_s = S // s_tile

    # Mask as f32 [B, 1, S] so the kernel block is [B_T, 1, S_T] (S on lanes).
    mask3 = attention_mask.astype(jnp.float32).reshape(B, 1, S)

    # Per-batch-tile count of sequence tiles that contain any non-padded token.
    pos = jnp.arange(S, dtype=jnp.int32)[None, :]
    eff_len = jnp.max(jnp.where(attention_mask > 0, pos + 1, 0), axis=1)   # [B]
    eff_len = jnp.max(eff_len.reshape(num_b, b_tile), axis=1)              # [num_b]
    n_valid_tiles = jnp.clip((eff_len + s_tile - 1) // s_tile, 1, num_s).astype(jnp.int32)

    # Explicit VMEM budget (double-buffered inputs + output + scratch), headroom kept.
    h_blk = b_tile * s_tile * H * itemsize
    m_blk = b_tile * s_tile * 4
    o_blk = b_tile * H * 4
    scratch = b_tile * H * 4 + b_tile * 128 * 4
    vmem_limit = int(min(max(2 * (2 * (h_blk + m_blk) + o_blk) + scratch + (4 << 20),
                             32 << 20),
                         56 << 20))

    pooled = pl.pallas_call(
        _mean_pool_kernel,
        out_shape=jax.ShapeDtypeStruct((B, 1, H), jnp.float32),
        grid_spec=pltpu.PrefetchScalarGridSpec(
            num_scalar_prefetch=1,
            grid=(num_b, num_s),
            in_specs=[
                # attention mask [B, 1, S]; clamp s so padded tiles reuse the same block.
                pl.BlockSpec((b_tile, 1, s_tile),
                             lambda b, s, nvt: (b, 0, jnp.minimum(s, nvt[b] - 1))),
                # hidden states [B, S, H], streamed in native dtype.
                pl.BlockSpec((b_tile, s_tile, H),
                             lambda b, s, nvt: (b, jnp.minimum(s, nvt[b] - 1), 0)),
            ],
            out_specs=pl.BlockSpec((b_tile, 1, H), lambda b, s, nvt: (b, 0, 0)),
            scratch_shapes=[
                pltpu.VMEM((b_tile, 1, H), jnp.float32),   # acc
                pltpu.VMEM((b_tile, 1, 1), jnp.float32),   # mask count
            ]),
        compiler_params=pltpu.CompilerParams(
            dimension_semantics=("parallel", "arbitrary"),
            vmem_limit_bytes=vmem_limit),
        cost_estimate=pl.CostEstimate(
            flops=2 * B * S * H,
            transcendentals=B,
            bytes_accessed=B * S * H * itemsize + B * S * 4 + B * H * 4),
    )(n_valid_tiles, mask3, last_hidden_state)

    return pooled.reshape(B, H)


def custom_model_head(last_hidden_state, attention_mask, fc_weight, fc_bias,
                      *, b_tile=None, s_tile=None):
    """CustomModel forward for the 'mean' pooling branch (given backbone output).

    fc_weight is stored as [H, C] (transposed vs torch nn.Linear's [C, H]).
    The fc stays in XLA so the Pallas kernel keeps a lane-dense [B, H] output.
    """
    pooled = masked_mean_pool(last_hidden_state, attention_mask,
                              b_tile=b_tile, s_tile=s_tile)
    logits = pooled @ fc_weight.astype(jnp.float32) + fc_bias.astype(jnp.float32)[None, :]
    return pooled, logits


# ----------------------------------------------------------------------------
# Pure-JAX reference (mirrors MeanPooling + nn.Linear)
# ----------------------------------------------------------------------------
def reference(last_hidden_state, attention_mask, fc_weight, fc_bias):
    h = last_hidden_state.astype(jnp.float32)
    m = attention_mask.astype(jnp.float32)[:, :, None]
    sum_emb = jnp.sum(h * m, axis=1)
    sum_mask = jnp.maximum(jnp.sum(m, axis=1), 1e-9)
    pooled = sum_emb / sum_mask
    logits = pooled @ fc_weight.astype(jnp.float32) + fc_bias.astype(jnp.float32)[None, :]
    return pooled, logits


# ----------------------------------------------------------------------------
# Test
# ----------------------------------------------------------------------------
def _run_and_check(h, mask, w, b, *, b_tile=None, s_tile=None, atol=1e-2, rtol=1e-2):
    pooled, logits = custom_model_head(h, mask, w, b, b_tile=b_tile, s_tile=s_tile)
    pooled = jax.block_until_ready(pooled)
    logits = jax.block_until_ready(logits)
    ref_pooled, ref_logits = reference(h, mask, w, b)
    assert pooled.shape == ref_pooled.shape
    assert logits.shape == ref_logits.shape
    assert jnp.allclose(pooled, ref_pooled, atol=atol, rtol=rtol), (pooled, ref_pooled)
    assert jnp.allclose(logits, ref_logits, atol=atol, rtol=rtol), (logits, ref_logits)


if __name__ == "__main__":
    key = jax.random.PRNGKey(0)
    k1, k2, k3, k4 = jax.random.split(key, 4)

    # --- Config A: tiny shapes (full-extent blocks, grid = (1, 1)), f32 hidden ---
    B, S, H, C = 2, 8, 32, 4
    h_a = jax.random.normal(k1, (B, S, H), dtype=jnp.float32)
    lengths_a = jnp.array([6, 8], dtype=jnp.int32)
    mask_a = (jnp.arange(S)[None, :] < lengths_a[:, None]).astype(jnp.float32)
    # fc init matches _init_weight: weight ~ Normal(0, 1), bias = 0; stored [H, C].
    w_a = jax.random.normal(k2, (H, C), dtype=jnp.float32)
    b_a = jnp.zeros((C,), dtype=jnp.float32)
    _run_and_check(h_a, mask_a, w_a, b_a)

    # --- Config B: tiled path (batch 'parallel' x seq 'arbitrary'), bf16 hidden ---
    # B=16 -> 2 batch tiles of 8; S=256 with s_tile=128 -> 2 seq tiles; batch tile 0
    # has all lengths <= 128 so its second seq tile is skipped via scalar prefetch.
    B, S, H, C = 16, 256, 128, 4
    h_b = jax.random.normal(k3, (B, S, H), dtype=jnp.float32).astype(jnp.bfloat16)
    lengths_b = jnp.array([100, 37, 5, 128, 64, 12, 90, 1,
                           256, 130, 200, 150, 256, 129, 180, 3], dtype=jnp.int32)
    mask_b = (jnp.arange(S)[None, :] < lengths_b[:, None]).astype(jnp.float32)
    w_b = jax.random.normal(k4, (H, C), dtype=jnp.float32)
    b_b = jnp.zeros((C,), dtype=jnp.float32)
    _run_and_check(h_b, mask_b, w_b, b_b, s_tile=128)

    print("KERNEL_OK")
</pallas_src>

<mosaic_0001>
module attributes {stable_mosaic.version = 11 : i64} {
  func.func @_mean_pool_kernel(%arg0: i32, %arg1: i32, %arg2: memref<1xi32, #tpu.memory_space<smem>>, %arg3: memref<2x1x8xf32, #tpu.memory_space<vmem>>, %arg4: memref<2x8x32xf32, #tpu.memory_space<vmem>>, %arg5: memref<2x1x32xf32, #tpu.memory_space<vmem>>, %arg6: memref<2x1x32xf32, #tpu.memory_space<vmem>>, %arg7: memref<2x1x1xf32, #tpu.memory_space<vmem>>) attributes {dimension_semantics = [#tpu.dimension_semantics<parallel>, #tpu.dimension_semantics<arbitrary>], iteration_bounds = array<i64: 1, 1>, scalar_prefetch = 1 : i64, scratch_operands = 2 : i64, tpu.core_type = #tpu.core_type<tc>, window_params = [{transform_indices = @transform_0, window_bounds = array<i64: 2, 1, 8>}, {transform_indices = @transform_1, window_bounds = array<i64: 2, 8, 32>}, {transform_indices = @transform_2, window_bounds = array<i64: 2, 1, 32>}]} {
    %c0_i32 = arith.constant 0 : i32
    %0 = arith.cmpi eq, %arg1, %c0_i32 : i32
    %1 = arith.extui %0 : i1 to i32
    %c0_i32_0 = arith.constant 0 : i32
    %2 = arith.cmpi ne, %1, %c0_i32_0 : i32
    scf.if %2 {
      %cst = arith.constant 0.000000e+00 : f32
      %11 = vector.broadcast %cst : f32 to vector<2x1x32xf32>
      %c0 = arith.constant 0 : index
      %c0_4 = arith.constant 0 : index
      %c0_5 = arith.constant 0 : index
      %12 = vector.load %arg6[%c0, %c0_4, %c0_5] : memref<2x1x32xf32, #tpu.memory_space<vmem>>, vector<2x1x32xf32>
      tpu.vector_store %arg6[%c0, %c0_4, %c0_5], %11 {strides = array<i32>} : memref<2x1x32xf32, #tpu.memory_space<vmem>>, vector<2x1x32xf32>,
      %cst_6 = arith.constant 0.000000e+00 : f32
      %13 = vector.broadcast %cst_6 : f32 to vector<2x1x1xf32>
      %c0_7 = arith.constant 0 : index
      %c0_8 = arith.constant 0 : index
      %c0_9 = arith.constant 0 : index
      %14 = vector.load %arg7[%c0_7, %c0_8, %c0_9] : memref<2x1x1xf32, #tpu.memory_space<vmem>>, vector<2x1x1xf32>
      tpu.vector_store %arg7[%c0_7, %c0_8, %c0_9], %13 {strides = array<i32>} : memref<2x1x1xf32, #tpu.memory_space<vmem>>, vector<2x1x1xf32>,
    } else {
    }
    %3 = arith.index_cast %arg0 : i32 to index
    %4 = memref.load %arg2[%3] : memref<1xi32, #tpu.memory_space<smem>>
    %5 = arith.cmpi slt, %arg1, %4 : i32
    %6 = arith.extui %5 : i1 to i32
    %c0_i32_1 = arith.constant 0 : i32
    %7 = arith.cmpi ne, %6, %c0_i32_1 : i32
    scf.if %7 {
      %c0 = arith.constant 0 : index
      %c0_4 = arith.constant 0 : index
      %c0_5 = arith.constant 0 : index
      %11 = vector.load %arg3[%c0, %c0_4, %c0_5] : memref<2x1x8xf32, #tpu.memory_space<vmem>>, vector<2x1x8xf32>
      %c0_6 = arith.constant 0 : index
      %c0_7 = arith.constant 0 : index
      %c0_8 = arith.constant 0 : index
      %12 = vector.load %arg4[%c0_6, %c0_7, %c0_8] : memref<2x8x32xf32, #tpu.memory_space<vmem>>, vector<2x8x32xf32>
      %c0_9 = arith.constant 0 : index
      %c0_10 = arith.constant 0 : index
      %c0_11 = arith.constant 0 : index
      %13 = vector.load %arg6[%c0_9, %c0_10, %c0_11] : memref<2x1x32xf32, #tpu.memory_space<vmem>>, vector<2x1x32xf32>
      "tpu.trace_start"() <{level = 10 : i32, message = "bqs,bsh->bqh"}> : () -> ()
      %cst = arith.constant dense<0.000000e+00> : vector<2x1x32xf32>
      %14 = tpu.matmul %11, %12, %cst {dimension_numbers = #tpu.dot_dimension_numbers<[2], [1], [1], [2], [0, 0, 0, 1, 1, 2], [0], [0]>} : vector<2x1x8xf32>, vector<2x8x32xf32>, vector<2x1x32xf32> -> vector<2x1x32xf32>
      "tpu.trace_stop"() : () -> ()
      %15 = arith.addf %13, %14 : vector<2x1x32xf32>
      %c0_12 = arith.constant 0 : index
      %c0_13 = arith.constant 0 : index
      %c0_14 = arith.constant 0 : index
      %16 = vector.load %arg6[%c0_12, %c0_13, %c0_14] : memref<2x1x32xf32, #tpu.memory_space<vmem>>, vector<2x1x32xf32>
      tpu.vector_store %arg6[%c0_12, %c0_13, %c0_14], %15 {strides = array<i32>} : memref<2x1x32xf32, #tpu.memory_space<vmem>>, vector<2x1x32xf32>,
      %c0_15 = arith.constant 0 : index
      %c0_16 = arith.constant 0 : index
      %c0_17 = arith.constant 0 : index
      %17 = vector.load %arg7[%c0_15, %c0_16, %c0_17] : memref<2x1x1xf32, #tpu.memory_space<vmem>>, vector<2x1x1xf32>
      %cst_18 = arith.constant dense<0.000000e+00> : vector<2x1xf32>
      %18 = vector.multi_reduction <add>, %11, %cst_18 [2] : vector<2x1x8xf32> to vector<2x1xf32>
      %19 = vector.shape_cast %18 : vector<2x1xf32> to vector<2x1x1xf32>
      %20 = arith.addf %17, %19 : vector<2x1x1xf32>
      %c0_19 = arith.constant 0 : index
      %c0_20 = arith.constant 0 : index
      %c0_21 = arith.constant 0 : index
      %21 = vector.load %arg7[%c0_19, %c0_20, %c0_21] : memref<2x1x1xf32, #tpu.memory_space<vmem>>, vector<2x1x1xf32>
      tpu.vector_store %arg7[%c0_19, %c0_20, %c0_21], %20 {strides = array<i32>} : memref<2x1x1xf32, #tpu.memory_space<vmem>>, vector<2x1x1xf32>,
    } else {
    }
    %c0_i32_2 = arith.constant 0 : i32
    %8 = arith.cmpi eq, %arg1, %c0_i32_2 : i32
    %9 = arith.extui %8 : i1 to i32
    %c0_i32_3 = arith.constant 0 : i32
    %10 = arith.cmpi ne, %9, %c0_i32_3 : i32
    scf.if %10 {
      %c0 = arith.constant 0 : index
      %c0_4 = arith.constant 0 : index
      %c0_5 = arith.constant 0 : index
      %11 = vector.load %arg7[%c0, %c0_4, %c0_5] : memref<2x1x1xf32, #tpu.memory_space<vmem>>, vector<2x1x1xf32>
      %cst = arith.constant 9.99999971E-10 : f32
      %12 = vector.broadcast %cst : f32 to vector<2x1x1xf32>
      %13 = arith.maximumf %11, %12 : vector<2x1x1xf32>
      %14 = tpu.reciprocal %13 {approx = true} : vector<2x1x1xf32> -> vector<2x1x1xf32>
      %c0_6 = arith.constant 0 : index
      %c0_7 = arith.constant 0 : index
      %c0_8 = arith.constant 0 : index
      %15 = vector.load %arg6[%c0_6, %c0_7, %c0_8] : memref<2x1x32xf32, #tpu.memory_space<vmem>>, vector<2x1x32xf32>
      %16 = vector.broadcast %14 : vector<2x1x1xf32> to vector<2x1x32xf32>
      %17 = arith.mulf %15, %16 : vector<2x1x32xf32>
      %c0_9 = arith.constant 0 : index
      %c0_10 = arith.constant 0 : index
      %c0_11 = arith.constant 0 : index
      %18 = vector.load %arg5[%c0_9, %c0_10, %c0_11] : memref<2x1x32xf32, #tpu.memory_space<vmem>>, vector<2x1x32xf32>
      tpu.vector_store %arg5[%c0_9, %c0_10, %c0_11], %17 {strides = array<i32>} : memref<2x1x32xf32, #tpu.memory_space<vmem>>, vector<2x1x32xf32>,
    } else {
    }
    return
  }
  func.func @transform_0(%arg0: i32, %arg1: i32, %arg2: memref<1xi32, #tpu.memory_space<smem>>) -> (i32, i32, i32) {
    %0 = arith.index_cast %arg0 : i32 to index
    %1 = memref.load %arg2[%0] : memref<1xi32, #tpu.memory_space<smem>>
    %c1_i32 = arith.constant 1 : i32
    %2 = arith.subi %1, %c1_i32 : i32
    %3 = arith.minsi %arg1, %2 : i32
    %c0_i32 = arith.constant 0 : i32
    %c0_i32_0 = arith.constant 0 : i32
    return %arg0, %c0_i32, %3 : i32, i32, i32
  }
  func.func @transform_1(%arg0: i32, %arg1: i32, %arg2: memref<1xi32, #tpu.memory_space<smem>>) -> (i32, i32, i32) {
    %0 = arith.index_cast %arg0 : i32 to index
    %1 = memref.load %arg2[%0] : memref<1xi32, #tpu.memory_space<smem>>
    %c1_i32 = arith.constant 1 : i32
    %2 = arith.subi %1, %c1_i32 : i32
    %3 = arith.minsi %arg1, %2 : i32
    %c0_i32 = arith.constant 0 : i32
    %c0_i32_0 = arith.constant 0 : i32
    return %arg0, %3, %c0_i32 : i32, i32, i32
  }
  func.func @transform_2(%arg0: i32, %arg1: i32, %arg2: memref<1xi32, #tpu.memory_space<smem>>) -> (i32, i32, i32) {
    %c0_i32 = arith.constant 0 : i32
    %c0_i32_0 = arith.constant 0 : i32
    %c0_i32_1 = arith.constant 0 : i32
    return %arg0, %c0_i32, %c0_i32_0 : i32, i32, i32
  }
}

</mosaic_0001>

<llo_original>
// kernel: tpu_custom_call.1
$region0: #{tpu_custom_call.1}
  #allocation0 [shape = 'u32[]', space=smem, size = 0x4, offset = 0x4, fixed_abs, tag = 'smem constant byte address 0x4 - core index']
  #allocation1 [shape = 'u32[144,128]{1,0:T(1,128)}', space=vmem, size = 0x12000, scoped, tag = 'internal scratch']
  #allocation2 [shape = 'f32[2,1,32]{2,1,0:T(1,128)}', space=vmem, size = 0x400, scoped, tag = 'scratch operand']
  #allocation3 [shape = 'f32[2,1,1]{2,1,0:T(1,128)}', space=vmem, size = 0x400, scoped, tag = 'scratch operand']
  #allocation4 [shape = 's32[1]{0}', space=sflag, size = 0x4, scoped, tag = 'scoped memory for tpu_custom_call.1']
  #allocation5 [shape = 's32[1]{0:T(128)S(6)}', space=smem, size = 0x200, scoped, tag = 'prefetched SMEM operand 0']
  %s0 = inlined_call_operand.<no memory space> [shape: s32[1], index: 0, kind: input, shape index: {}]
  %s1 = inlined_call_operand.vmem [shape: f32[2,1,8], index: 1, kind: input, shape index: {}]
  %s2 = inlined_call_operand.hbm [shape: f32[2,8,32], index: 2, kind: input, shape index: {}]
  %s3 = inlined_call_operand.hbm [shape: f32[2,1,32], index: 3, kind: output, shape index: {}]
  %s4 = sld [smem:[#allocation0]]
  $region34: #{tpu_custom_call.1} parent=0
    _
  %s6 = ssub.s32 1, %s4
  %s7 = scalar_select 0, %s6, %s4
  %8 = sst [smem:[#allocation5]] %s0
  $region1: #{tpu_custom_call.1} parent=0
    #allocation6 [shape = 'u8[8192]{0}', space=vmem, size = 0x2000, scoped, tag = 'input window, operand 2, single buffered']
    #allocation7 [shape = 's32[1]{0}', space=sflag, size = 0x4, scoped, tag = 'scoped memory for tpu_custom_call.1']
    #allocation8 [shape = 's32[1]{0}', space=sflag, size = 0x4, scoped, tag = 'scoped memory for tpu_custom_call.1']
    #allocation9 [shape = 'u8[1024]{0}', space=vmem, size = 0x400, scoped, tag = 'output window, operand 0, single buffered']
    %9 = vsyncpa [#allocation7], 0
    %10 = vsyncpa [#allocation8], 0
    // Predicated region
    $region2: #{tpu_custom_call.1} parent=1 // pred_check
      _
    $region3: #{tpu_custom_call.1} parent=1 // pred_check_branch
      %12 = sbr.rel (0) target = $region5
    $region4: #{tpu_custom_call.1} parent=1 // pred_region
      %s13 = sld [smem:[#allocation5]]
      %s14 = ssub.s32 %s13, 1
      %p15 = scmp.lt.s32.totalorder 0, %s14
      %s16 = scalar_select %p15, 0, %s14
      %p17 = scmp.lt.s32.totalorder %s16, 0
      %s18 = scalar_select %p17, %s16, 0
      %s19 = scalar_lea.vmem %s1, %s18
      %s20 = sld [smem:[#allocation5]]
      %s21 = ssub.s32 %s20, 1
      %p22 = scmp.lt.s32.totalorder 0, %s21
      %s23 = scalar_select %p22, 0, %s21
    $region5: #{tpu_custom_call.1} parent=1 // pred_fallthru
      _
    // Predicated region
    $region6: #{tpu_custom_call.1} parent=1 // pred_check
      _
    $region7: #{tpu_custom_call.1} parent=1 // pred_check_branch
      %25 = sbr.rel (0) target = $region9
    $region8: #{tpu_custom_call.1} parent=1 // pred_region
      %s26 = sld [smem:[#allocation5]]
      %s27 = ssub.s32 %s26, 1
      %p28 = scmp.lt.s32.totalorder 0, %s27
      %s29 = scalar_select %p28, 0, %s27
      %s31 = ssub.s32 256, 256
      %32 = vsyncadd [#allocation7], %s31
      %s33 = smul.addr %s29, 128
      %s34 = scalar_lea.hbm %s2, %s33
      %s35 = sshll.u32 [#allocation6], 4
      %s36 = int_to_ptr.vmem [resolvable:$true] %s35
      %41 = dma.hbm_to_vmem [thread:$0]  %s34, 256, %s36, [#allocation7], 128, 128, 8
    $region9: #{tpu_custom_call.1} parent=1 // pred_fallthru
      _
    // Predicated region
    $region10: #{tpu_custom_call.1} parent=1 // pred_check
      _
    $region11: #{tpu_custom_call.1} parent=1 // pred_check_branch
      %43 = sbr.rel (0) target = $region13
    $region12: #{tpu_custom_call.1} parent=1 // pred_region
      %44 = dma.done [#allocation7], 256
    $region13: #{tpu_custom_call.1} parent=1 // pred_fallthru
      _
    %s45 = sld [smem:[#allocation5]]
    %s46 = ssub.s32 %s45, 1
    %p47 = scmp.lt.s32.totalorder 0, %s46
    %s48 = scalar_select %p47, 0, %s46
    %p49 = scmp.lt.s32.totalorder %s48, 0
    %s50 = scalar_select %p49, %s48, 0
    %s51 = scalar_lea.vmem %s1, %s50
    %s52 = sld [smem:[#allocation5]]
    %s53 = ssub.s32 %s52, 1
    %p54 = scmp.lt.s32.totalorder 0, %s53
    %s55 = scalar_select %p54, 0, %s53
    %p56 = scmp.lt.s32.totalorder %s55, 0
    %s57 = scalar_select %p56, %s55, 0
    %s58 = scalar_lea.vmem %s1, %s57
    %s59 = sld [smem:[#allocation5]]
    %s60 = ssub.s32 %s59, 1
    %p61 = scmp.lt.s32.totalorder 0, %s60
    %s62 = scalar_select %p61, 0, %s60
    %s63 = sld [smem:[#allocation5]]
    %s64 = ssub.s32 %s63, 1
    %p65 = scmp.lt.s32.totalorder 0, %s64
    %s66 = scalar_select %p65, 0, %s64
    %p67 = scmp.eq.s32.totalorder 0, 0
    // Predicated region
    $region14: #{tpu_custom_call.1} parent=1 // pred_check
      %p68 = pneg %p67
    $region15: #{tpu_custom_call.1} parent=1 // pred_check_branch
      %70 = sbr.rel (%p68) target = $region17
    $region16: #{tpu_custom_call.1} parent=1 // pred_region
      %vm71 = vcmask 253952
      %72 = vst.msk [vmem:[#allocation2] sm:$0x1] %vm71, 0.0
      %73 = vst.msk [vmem:[#allocation2 + $0x1] sm:$0x1] %vm71, 0.0
      %vm74 = vcmask 0
      %75 = vst.msk [vmem:[#allocation3] sm:$0x1] %vm74, 0.0
      %76 = vst.msk [vmem:[#allocation3 + $0x1] sm:$0x1] %vm74, 0.0
    $region17: #{tpu_custom_call.1} parent=1 // pred_fallthru
      _
    %s77 = sld [smem:[#allocation5]]
    %p78 = scmp.lt.s32.totalorder 0, %s77
    // Predicated region
    $region18: #{tpu_custom_call.1} parent=1 // pred_check
      %p79 = pneg %p78
    $region19: #{tpu_custom_call.1} parent=1 // pred_check_branch
      %81 = sbr.rel (%p79) target = $region21
    $region20: #{tpu_custom_call.1} parent=1 // pred_region
      %v82 = vld [vmem:[%s58] sm:$0x1]
      %v83 = vld [vmem:[%s58 + $0x1] sm:$0x1]
      %v84 = vld [vmem:[#allocation6] sm:$0xff]
      %v85 = vld [vmem:[#allocation6 + $0x8] sm:$0xff]
      %v86 = vld [vmem:[#allocation2] sm:$0x1]
      %v87 = vld [vmem:[#allocation2 + $0x1] sm:$0x1]
      %vm88 = vcmask 64512
      %v90 = vsel %vm88, %v82, 0
      %92 = vmatprep.subr.mxu0 0.0
      %93 = vmatpush1.msra.mxu0 %v84
      %94 = vmatprep.subr.mxu0 0.0
      %95 = vmatpush1.msra.mxu0 0.0
      %96 = vmatprep.subr.mxu0 0.0
      %97 = vmatpush1.msra.mxu0 0.0
      %98 = vmatprep.subr.mxu0 0.0
      %99 = vmatpush1.msra.mxu0 0.0
      %100 = vmatprep.subr.mxu0 0.0
      %101 = vmatpush1.msra.mxu0 0.0
      %102 = vmatprep.subr.mxu0 0.0
      %103 = vmatpush1.msra.mxu0 0.0
      %104 = vmatprep.subr.mxu0 0.0
      %105 = vmatpush1.msra.mxu0 0.0
      %106 = vmatprep.subr.mxu0 0.0
      %107 = vmatpush1.msra.mxu0 0.0
      %108 = vmatprep.subr.mxu0 0.0
      %109 = vmatpush1.msra.mxu0 0.0
      %110 = vmatprep.subr.mxu0 0.0
      %111 = vmatpush1.msra.mxu0 0.0
      %112 = vmatprep.subr.mxu0 0.0
      %113 = vmatpush1.msra.mxu0 0.0
      %114 = vmatprep.subr.mxu0 0.0
      %115 = vmatpush1.msra.mxu0 0.0
      %116 = vmatprep.subr.mxu0 0.0
      %117 = vmatpush1.msra.mxu0 0.0
      %118 = vmatprep.subr.mxu0 0.0
      %119 = vmatpush1.msra.mxu0 0.0
      %120 = vmatprep.subr.mxu0 0.0
      %121 = vmatpush1.msra.mxu0 0.0
      %122 = vmatprep.subr.mxu0 0.0
      %123 = vmatpush1.msra.mxu0 0.0
      %124 = vmatprep.subr.mxu0 0.0
      %125 = vmatpush1.msra.mxu0 0.0
      %126 = vmatprep.subr.mxu0 0.0
      %127 = vmatpush1.msra.mxu0 0.0
      %128 = vmatprep.subr.mxu0 0.0
      %129 = vmatpush1.msra.mxu0 0.0
      %130 = vmatprep.subr.mxu0 0.0
      %131 = vmatpush1.msra.mxu0 0.0
      %132 = vmatprep.subr.mxu0 0.0
      %133 = vmatpush1.msra.mxu0 0.0
      %134 = vmatprep.subr.mxu0 0.0
      %135 = vmatpush1.msra.mxu0 0.0
      %136 = vmatprep.subr.mxu0 0.0
      %137 = vmatpush1.msra.mxu0 0.0
      %138 = vmatprep.subr.mxu0 0.0
      %139 = vmatpush1.msra.mxu0 0.0
      %140 = vmatprep.subr.mxu0 0.0
      %141 = vmatpush1.msra.mxu0 0.0
      %142 = vmatprep.subr.mxu0 0.0
      %143 = vmatpush1.msra.mxu0 0.0
      %144 = vmatprep.subr.mxu0 0.0
      %145 = vmatpush1.msra.mxu0 0.0
      %146 = vmatprep.subr.mxu0 0.0
      %147 = vmatpush1.msra.mxu0 0.0
      %148 = vmatprep.subr.mxu0 0.0
      %149 = vmatpush1.msra.mxu0 0.0
      %150 = vmatprep.subr.mxu0 0.0
      %151 = vmatpush1.msra.mxu0 0.0
      %152 = vmatprep.subr.mxu0 0.0
      %153 = vmatpush1.msra.mxu0 0.0
      %154 = vmatprep.subr.mxu0 0.0
      %155 = vmatpush1.msra.mxu0 0.0
      %156 = vmatprep.mubr.f32.mxu0 0.0
      %157 = vmatmul.mubr.f32.gmra.mrb[0].mxu0 %v90
      %v158 = vpop.f32.mrb[0].mxu0
      %v159 = vadd.f32 0.0, %v158
      %v160 = vpop.f32.mrb[0].mxu0
      %161 = vdwg.mxu0
      %v163 = vsel %vm88, %v83, 0
      %165 = vmatprep.subr.mxu0 0.0
      %166 = vmatpush1.msra.mxu0 %v85
      %167 = vmatprep.subr.mxu0 0.0
      %168 = vmatpush1.msra.mxu0 0.0
      %169 = vmatprep.subr.mxu0 0.0
      %170 = vmatpush1.msra.mxu0 0.0
      %171 = vmatprep.subr.mxu0 0.0
      %172 = vmatpush1.msra.mxu0 0.0
      %173 = vmatprep.subr.mxu0 0.0
      %174 = vmatpush1.msra.mxu0 0.0
      %175 = vmatprep.subr.mxu0 0.0
      %176 = vmatpush1.msra.mxu0 0.0
      %177 = vmatprep.subr.mxu0 0.0
      %178 = vmatpush1.msra.mxu0 0.0
      %179 = vmatprep.subr.mxu0 0.0
      %180 = vmatpush1.msra.mxu0 0.0
      %181 = vmatprep.subr.mxu0 0.0
      %182 = vmatpush1.msra.mxu0 0.0
      %183 = vmatprep.subr.mxu0 0.0
      %184 = vmatpush1.msra.mxu0 0.0
      %185 = vmatprep.subr.mxu0 0.0
      %186 = vmatpush1.msra.mxu0 0.0
      %187 = vmatprep.subr.mxu0 0.0
      %188 = vmatpush1.msra.mxu0 0.0
      %189 = vmatprep.subr.mxu0 0.0
      %190 = vmatpush1.msra.mxu0 0.0
      %191 = vmatprep.subr.mxu0 0.0
      %192 = vmatpush1.msra.mxu0 0.0
      %193 = vmatprep.subr.mxu0 0.0
      %194 = vmatpush1.msra.mxu0 0.0
      %195 = vmatprep.subr.mxu0 0.0
      %196 = vmatpush1.msra.mxu0 0.0
      %197 = vmatprep.subr.mxu0 0.0
      %198 = vmatpush1.msra.mxu0 0.0
      %199 = vmatprep.subr.mxu0 0.0
      %200 = vmatpush1.msra.mxu0 0.0
      %201 = vmatprep.subr.mxu0 0.0
      %202 = vmatpush1.msra.mxu0 0.0
      %203 = vmatprep.subr.mxu0 0.0
      %204 = vmatpush1.msra.mxu0 0.0
      %205 = vmatprep.subr.mxu0 0.0
      %206 = vmatpush1.msra.mxu0 0.0
      %207 = vmatprep.subr.mxu0 0.0
      %208 = vmatpush1.msra.mxu0 0.0
      %209 = vmatprep.subr.mxu0 0.0
      %210 = vmatpush1.msra.mxu0 0.0
      %211 = vmatprep.subr.mxu0 0.0
      %212 = vmatpush1.msra.mxu0 0.0
      %213 = vmatprep.subr.mxu0 0.0
      %214 = vmatpush1.msra.mxu0 0.0
      %215 = vmatprep.subr.mxu0 0.0
      %216 = vmatpush1.msra.mxu0 0.0
      %217 = vmatprep.subr.mxu0 0.0
      %218 = vmatpush1.msra.mxu0 0.0
      %219 = vmatprep.subr.mxu0 0.0
      %220 = vmatpush1.msra.mxu0 0.0
      %221 = vmatprep.subr.mxu0 0.0
      %222 = vmatpush1.msra.mxu0 0.0
      %223 = vmatprep.subr.mxu0 0.0
      %224 = vmatpush1.msra.mxu0 0.0
      %225 = vmatprep.subr.mxu0 0.0
      %226 = vmatpush1.msra.mxu0 0.0
      %227 = vmatprep.subr.mxu0 0.0
      %228 = vmatpush1.msra.mxu0 0.0
      %229 = vmatprep.mubr.f32.mxu0 0.0
      %230 = vmatmul.mubr.f32.gmra.mrb[0].mxu0 %v163
      %v231 = vpop.f32.mrb[0].mxu0
      %v232 = vadd.f32 0.0, %v231
      %v233 = vpop.f32.mrb[0].mxu0
      %234 = vdwg.mxu0
      %v235 = vadd.f32 %v86, %v159
      %v236 = vadd.f32 %v87, %v232
      %vm237 = vcmask 253952
      %238 = vst.msk [vmem:[#allocation2] sm:$0x1] %vm237, %v235
      %239 = vst.msk [vmem:[#allocation2 + $0x1] sm:$0x1] %vm237, %v236
      %v240 = vld [vmem:[#allocation3] sm:$0x1]
      %v241 = vld [vmem:[#allocation3 + $0x1] sm:$0x1]
      %vm242 = vcmask 57344
      %v243 = vsel %vm242, %v82, 0.0
      %244 = vadd.xlane.f32.xlu0 %v243
      %v245 = vpop.xlane.xlu0 %244
      %v246 = vsel %vm242, %v83, 0.0
      %247 = vadd.xlane.f32.xlu0 %v246
      %v248 = vpop.xlane.xlu0 %247
      %v249 = vadd.f32 %v240, %v245
      %v250 = vadd.f32 %v241, %v248
      %vm251 = vcmask 0
      %252 = vst.msk [vmem:[#allocation3] sm:$0x1] %vm251, %v249
      %253 = vst.msk [vmem:[#allocation3 + $0x1] sm:$0x1] %vm251, %v250
    $region21: #{tpu_custom_call.1} parent=1 // pred_fallthru
      _
    // Predicated region
    $region22: #{tpu_custom_call.1} parent=1 // pred_check
      %p254 = pneg %p67
    $region23: #{tpu_custom_call.1} parent=1 // pred_check_branch
      %256 = sbr.rel (%p254) target = $region25
    $region24: #{tpu_custom_call.1} parent=1 // pred_region
      %v257 = vld [vmem:[#allocation3] sm:$0x1]
      %v258 = vld [vmem:[#allocation3 + $0x1] sm:$0x1]
      %v259 = vmax.f32 %v257, 1e-09
      %v260 = vmax.f32 %v258, 1e-09
      %v261 = vrcp.pop %v259
      %v262 = vrcp.pop %v260
      %v263 = vld [vmem:[#allocation2] sm:$0x1]
      %v264 = vld [vmem:[#allocation2 + $0x1] sm:$0x1]
      %266 = vset.pattern.permute.xlu0 0
      %267 = vperm.xlu0 %266, %v261
      %v268 = vpop.permute.xlu0 %267
      %v270 = vlaneseq
      %v271 = vshrl.u32 %v270, 7
      %v272 = vsub.s32 0, %v271
      %v273 = vrot.slane %v268, %v272
      %275 = vset.pattern.permute.xlu0 0
      %276 = vperm.xlu0 %275, %v262
      %v277 = vpop.permute.xlu0 %276
      %v279 = vlaneseq
      %v280 = vshrl.u32 %v279, 7
      %v281 = vsub.s32 0, %v280
      %v282 = vrot.slane %v277, %v281
      %v283 = vmul.f32 %v263, %v273
      %v284 = vmul.f32 %v264, %v282
      %vm285 = vcmask 253952
      %286 = vst.msk [vmem:[#allocation9] sm:$0x1] %vm285, %v283
      %287 = vst.msk [vmem:[#allocation9 + $0x1] sm:$0x1] %vm285, %v284
    $region25: #{tpu_custom_call.1} parent=1 // pred_fallthru
      _
    // Predicated region
    $region26: #{tpu_custom_call.1} parent=1 // pred_check
      _
    $region27: #{tpu_custom_call.1} parent=1 // pred_check_branch
      %289 = sbr.rel (0) target = $region29
    $region28: #{tpu_custom_call.1} parent=1 // pred_region
      %s291 = ssub.s32 32, 32
      %292 = vsyncadd [#allocation8], %s291
      %s293 = sshll.u32 [#allocation9], 4
      %s294 = int_to_ptr.vmem [resolvable:$true] %s293
      %299 = dma.vmem_to_hbm [thread:$0]  %s294, 32, %s3, [#allocation8], 16, 16, 1
    $region29: #{tpu_custom_call.1} parent=1 // pred_fallthru
      _
    // Predicated region
    $region30: #{tpu_custom_call.1} parent=1 // pred_check
      _
    $region31: #{tpu_custom_call.1} parent=1 // pred_check_branch
      %301 = sbr.rel (0) target = $region33
    $region32: #{tpu_custom_call.1} parent=1 // pred_region
      %302 = dma.done [#allocation8], 32
    $region33: #{tpu_custom_call.1} parent=1 // pred_fallthru
      _
    %303 = vsyncpa [#allocation7], 1
    %304 = vsyncpa [#allocation8], 1

</llo_original>
